<compile_context>
chip_gen: v5e
topology: v5e:2x2
jax: 0.10.0
libtpu: 0.0.40
codegen_flags: <defaults>
</compile_context>

<pallas_src>
import functools

import jax
import jax.numpy as jnp
from jax import lax
from jax.experimental import pallas as pl
from jax.experimental.pallas import tpu as pltpu


def _round_up(a: int, b: int) -> int:
    return (a + b - 1) // b * b


def _ia3_kernel_accum_in_out(x_ref, w_ref, sb_ref, o_ref):
    """Output dtype is f32: accumulate directly into the resident o block.

    x_ref:  (tm, tk)   compute dtype
    w_ref:  (tn, tk)   compute dtype  (native nn.Linear layout: out x in)
    sb_ref: (2, tn)    f32, row 0 = eff scaling, row 1 = bias * eff
    o_ref:  (tm, tn)   f32
    """
    k = pl.program_id(2)

    @pl.when(k == 0)
    def _():
        o_ref[...] = jnp.zeros_like(o_ref)

    # x @ W^T via contraction of the last dims of both tiles (MXU).
    o_ref[...] += lax.dot_general(
        x_ref[...], w_ref[...],
        dimension_numbers=(((1,), (1,)), ((), ())),
        preferred_element_type=jnp.float32)

    @pl.when(k == pl.num_programs(2) - 1)
    def _():
        eff = sb_ref[0:1, :]     # (1, tn)
        beff = sb_ref[1:2, :]    # (1, tn)
        o_ref[...] = o_ref[...] * eff + beff


def _ia3_kernel_scratch(x_ref, w_ref, sb_ref, o_ref, acc_ref):
    """Narrow output dtype: f32 VMEM accumulator, cast at finalize."""
    k = pl.program_id(2)

    @pl.when(k == 0)
    def _():
        acc_ref[...] = jnp.zeros_like(acc_ref)

    acc_ref[...] += lax.dot_general(
        x_ref[...], w_ref[...],
        dimension_numbers=(((1,), (1,)), ((), ())),
        preferred_element_type=jnp.float32)

    @pl.when(k == pl.num_programs(2) - 1)
    def _():
        eff = sb_ref[0:1, :]
        beff = sb_ref[1:2, :]
        o_ref[...] = (acc_ref[...] * eff + beff).astype(o_ref.dtype)


@functools.partial(jax.jit, static_argnames=("tm", "tn", "tk", "compute_dtype"))
def ia3_forward(x, weight, bias, ia3_scaling, sparsity_mask,
                *, tm=512, tn=256, tk=1024, compute_dtype=jnp.bfloat16):
    """IA3Layer.forward.

    x:             (B, S, K)  float32
    weight:        (N, K)     float32   (PyTorch nn.Linear convention)
    bias:          (N,)       float32
    ia3_scaling:   (N,)       float32
    sparsity_mask: (N,)       float32
    compute_dtype: dtype of the matmul operands (default bf16; accumulation
                   is always f32).  Pass None to keep the input dtype.
    returns:       (B, S, N)  float32
    """
    B, S, K = x.shape
    N = weight.shape[0]
    M = B * S
    out_dtype = x.dtype

    cdt = x.dtype if compute_dtype is None else jnp.dtype(compute_dtype)
    in_itemsize = cdt.itemsize
    out_itemsize = jnp.dtype(out_dtype).itemsize
    # Sublane packing granularity for the x operand's second-minor dim.
    sub = 8 if in_itemsize >= 4 else (16 if in_itemsize == 2 else 32)

    # Adaptive tile sizes: big MXU-friendly tiles, clamped for small shapes
    # so blocks always satisfy the (8, 128) constraints after padding.
    tm = min(tm, _round_up(M, sub))
    tn = min(tn, _round_up(N, 128))
    tk = min(tk, _round_up(K, 128))

    Mp = _round_up(M, tm)
    Np = _round_up(N, tn)
    Kp = _round_up(K, tk)

    # v7x has 2 TensorCores sharded over the "parallel" axes: if the parallel
    # grid collapses to a single block, split N (preferred) or M when possible.
    if (Mp // tm) * (Np // tn) < 2:
        if tn >= 256:
            tn //= 2
            Np = _round_up(N, tn)
        elif tm >= 2 * sub:
            tm = _round_up(tm // 2, sub)
            Mp = _round_up(M, tm)

    # --- one-time per-call prep (cheap vectors + casts; no weight transpose)
    x2 = x.reshape(M, K)
    if x2.dtype != cdt:
        x2 = x2.astype(cdt)
    w2 = weight if weight.dtype == cdt else weight.astype(cdt)   # (N, K)

    eff = jnp.where(sparsity_mask > 0.5, ia3_scaling,
                    jnp.ones_like(ia3_scaling)).astype(jnp.float32)   # (N,)
    beff = bias.astype(jnp.float32) * eff                             # (N,)

    # Pad only when required (keeps HBM round-trips off the fast path).
    if Mp != M or Kp != K:
        x2 = jnp.pad(x2, ((0, Mp - M), (0, Kp - K)))
    if Np != N or Kp != K:
        w2 = jnp.pad(w2, ((0, Np - N), (0, Kp - K)))
    if Np != N:
        eff = jnp.pad(eff, (0, Np - N), constant_values=1.0)
        beff = jnp.pad(beff, (0, Np - N))
    sb = jnp.stack([eff, beff], axis=0)                               # (2, Np)

    use_scratch = out_dtype != jnp.float32
    kernel = _ia3_kernel_scratch if use_scratch else _ia3_kernel_accum_in_out
    scratch_shapes = [pltpu.VMEM((tm, tn), jnp.float32)] if use_scratch else []

    # VMEM budget: double-buffered x/W/out tiles (+ optional f32 accumulator
    # and the packed scale/bias vector), 2x headroom, capped at 48 MiB so we
    # stay well inside v7x's 64 MiB physical VMEM per TensorCore.
    vmem_bytes = (2 * tm * tk * in_itemsize            # x tiles
                  + 2 * tn * tk * in_itemsize          # weight tiles
                  + 2 * tm * tn * out_itemsize         # output tiles
                  + (tm * tn * 4 if use_scratch else 0)
                  + 2 * 2 * tn * 4)                    # packed eff / beff
    vmem_limit = min(48 * 1024 * 1024, max(2 * vmem_bytes, 16 * 1024 * 1024))

    cost = pl.CostEstimate(
        flops=2 * M * K * N,
        transcendentals=0,
        bytes_accessed=(M * K + N * K) * in_itemsize
                       + 2 * N * 4
                       + M * N * out_itemsize,
    )

    grid = (Mp // tm, Np // tn, Kp // tk)

    out = pl.pallas_call(
        kernel,
        out_shape=jax.ShapeDtypeStruct((Mp, Np), out_dtype),
        grid=grid,
        in_specs=[
            pl.BlockSpec((tm, tk), lambda i, j, k: (i, k)),   # x tile
            pl.BlockSpec((tn, tk), lambda i, j, k: (j, k)),   # W tile (N,K)
            pl.BlockSpec((2, tn), lambda i, j, k: (0, j)),    # [eff; bias*eff]
        ],
        out_specs=pl.BlockSpec((tm, tn), lambda i, j, k: (i, j)),
        scratch_shapes=scratch_shapes,
        compiler_params=pltpu.CompilerParams(
            dimension_semantics=("parallel", "parallel", "arbitrary"),
            vmem_limit_bytes=int(vmem_limit),
        ),
        cost_estimate=cost,
    )(x2, w2, sb)

    if Mp != M or Np != N:
        out = out[:M, :N]
    return out.reshape(B, S, N)


if __name__ == "__main__":
    key = jax.random.PRNGKey(0)
    k_x, k_w, k_b, k_s = jax.random.split(key, 4)

    B, S, K, N = 2, 8, 32, 64
    init_std = 0.02

    # Inputs / frozen base Linear params (deterministic synthetic init).
    x = jax.random.normal(k_x, (B, S, K), dtype=jnp.float32)
    weight = jax.random.normal(k_w, (N, K), dtype=jnp.float32) * (1.0 / K**0.5)
    bias = jax.random.normal(k_b, (N,), dtype=jnp.float32) * 0.01

    # IA3 parameters: scaling ~ N(1.0, init_std), mask with some zeros.
    ia3_scaling = 1.0 + init_std * jax.random.normal(k_s, (N,), dtype=jnp.float32)
    sparsity_mask = (jnp.arange(N) % 3 != 0).astype(jnp.float32)

    out = ia3_forward(x, weight, bias, ia3_scaling, sparsity_mask)
    out = jax.block_until_ready(out)
    assert out.shape == (B, S, N)

    eff = jnp.where(sparsity_mask > 0.5, ia3_scaling, jnp.ones_like(ia3_scaling))

    # Reference with matching bf16 operands / f32 accumulation (what the
    # kernel computes) -> tight tolerance.
    base_bf16 = jnp.einsum("bsk,nk->bsn",
                           x.astype(jnp.bfloat16), weight.astype(jnp.bfloat16),
                           preferred_element_type=jnp.float32) + bias
    ref_bf16 = base_bf16 * eff.reshape(1, 1, -1)
    assert jnp.allclose(out, ref_bf16, atol=2e-3, rtol=2e-3)

    # Full-precision reference -> loose tolerance (expected bf16 rounding).
    base_f32 = jnp.einsum("bsk,nk->bsn", x, weight) + bias
    ref_f32 = base_f32 * eff.reshape(1, 1, -1)
    assert jnp.allclose(out, ref_f32, atol=5e-2, rtol=5e-2)

    print("KERNEL_OK")
</pallas_src>

<mosaic_0001>
module attributes {stable_mosaic.version = 11 : i64} {
  func.func @_ia3_kernel_accum_in_out(%arg0: i32, %arg1: i32, %arg2: i32, %arg3: memref<16x128xbf16, #tpu.memory_space<vmem>>, %arg4: memref<128x128xbf16, #tpu.memory_space<vmem>>, %arg5: memref<2x128xf32, #tpu.memory_space<vmem>>, %arg6: memref<16x128xf32, #tpu.memory_space<vmem>>) attributes {dimension_semantics = [#tpu.dimension_semantics<parallel>, #tpu.dimension_semantics<parallel>, #tpu.dimension_semantics<arbitrary>], iteration_bounds = array<i64: 1, 1, 1>, scalar_prefetch = 0 : i64, scratch_operands = 0 : i64, tpu.core_type = #tpu.core_type<tc>, window_params = [{transform_indices = @transform_0, window_bounds = array<i64: 16, 128>}, {transform_indices = @transform_1, window_bounds = array<i64: 128, 128>}, {transform_indices = @transform_2, window_bounds = array<i64: 2, 128>}, {transform_indices = @transform_3, window_bounds = array<i64: 16, 128>}]} {
    %c0_i32 = arith.constant 0 : i32
    %0 = arith.cmpi eq, %arg2, %c0_i32 : i32
    %1 = arith.extui %0 : i1 to i32
    %c0_i32_0 = arith.constant 0 : i32
    %2 = arith.cmpi ne, %1, %c0_i32_0 : i32
    scf.if %2 {
      %cst_10 = arith.constant 0.000000e+00 : f32
      %12 = vector.broadcast %cst_10 : f32 to vector<16x128xf32>
      %c0_11 = arith.constant 0 : index
      %c0_12 = arith.constant 0 : index
      %13 = vector.load %arg6[%c0_11, %c0_12] : memref<16x128xf32, #tpu.memory_space<vmem>>, vector<16x128xf32>
      tpu.vector_store %arg6[%c0_11, %c0_12], %12 {strides = array<i32>} : memref<16x128xf32, #tpu.memory_space<vmem>>, vector<16x128xf32>,
    } else {
    }
    %c0 = arith.constant 0 : index
    %c0_1 = arith.constant 0 : index
    %3 = vector.load %arg6[%c0, %c0_1] : memref<16x128xf32, #tpu.memory_space<vmem>>, vector<16x128xf32>
    %c0_2 = arith.constant 0 : index
    %c0_3 = arith.constant 0 : index
    %4 = vector.load %arg3[%c0_2, %c0_3] : memref<16x128xbf16, #tpu.memory_space<vmem>>, vector<16x128xbf16>
    %c0_4 = arith.constant 0 : index
    %c0_5 = arith.constant 0 : index
    %5 = vector.load %arg4[%c0_4, %c0_5] : memref<128x128xbf16, #tpu.memory_space<vmem>>, vector<128x128xbf16>
    %cst = arith.constant dense<0.000000e+00> : vector<16x128xf32>
    %6 = tpu.matmul %4, %5, %cst {dimension_numbers = #tpu.dot_dimension_numbers<[1], [1], [0], [0], [0, 0, 1, 0], [], []>} : vector<16x128xbf16>, vector<128x128xbf16>, vector<16x128xf32> -> vector<16x128xf32>
    %7 = arith.addf %3, %6 : vector<16x128xf32>
    %c0_6 = arith.constant 0 : index
    %c0_7 = arith.constant 0 : index
    %8 = vector.load %arg6[%c0_6, %c0_7] : memref<16x128xf32, #tpu.memory_space<vmem>>, vector<16x128xf32>
    tpu.vector_store %arg6[%c0_6, %c0_7], %7 {strides = array<i32>} : memref<16x128xf32, #tpu.memory_space<vmem>>, vector<16x128xf32>,
    %c0_i32_8 = arith.constant 0 : i32
    %9 = arith.cmpi eq, %arg2, %c0_i32_8 : i32
    %10 = arith.extui %9 : i1 to i32
    %c0_i32_9 = arith.constant 0 : i32
    %11 = arith.cmpi ne, %10, %c0_i32_9 : i32
    scf.if %11 {
      %c0_10 = arith.constant 0 : index
      %c0_11 = arith.constant 0 : index
      %12 = vector.load %arg5[%c0_10, %c0_11] : memref<2x128xf32, #tpu.memory_space<vmem>>, vector<1x128xf32>
      %c1 = arith.constant 1 : index
      %c0_12 = arith.constant 0 : index
      %13 = vector.load %arg5[%c1, %c0_12] : memref<2x128xf32, #tpu.memory_space<vmem>>, vector<1x128xf32>
      %c0_13 = arith.constant 0 : index
      %c0_14 = arith.constant 0 : index
      %14 = vector.load %arg6[%c0_13, %c0_14] : memref<16x128xf32, #tpu.memory_space<vmem>>, vector<16x128xf32>
      %15 = vector.broadcast %12 : vector<1x128xf32> to vector<16x128xf32>
      %16 = arith.mulf %14, %15 : vector<16x128xf32>
      %17 = vector.broadcast %13 : vector<1x128xf32> to vector<16x128xf32>
      %18 = arith.addf %16, %17 : vector<16x128xf32>
      %c0_15 = arith.constant 0 : index
      %c0_16 = arith.constant 0 : index
      %19 = vector.load %arg6[%c0_15, %c0_16] : memref<16x128xf32, #tpu.memory_space<vmem>>, vector<16x128xf32>
      tpu.vector_store %arg6[%c0_15, %c0_16], %18 {strides = array<i32>} : memref<16x128xf32, #tpu.memory_space<vmem>>, vector<16x128xf32>,
    } else {
    }
    return
  }
  func.func @transform_0(%arg0: i32, %arg1: i32, %arg2: i32) -> (i32, i32) {
    %c0_i32 = arith.constant 0 : i32
    return %arg0, %arg2 : i32, i32
  }
  func.func @transform_1(%arg0: i32, %arg1: i32, %arg2: i32) -> (i32, i32) {
    %c0_i32 = arith.constant 0 : i32
    return %arg1, %arg2 : i32, i32
  }
  func.func @transform_2(%arg0: i32, %arg1: i32, %arg2: i32) -> (i32, i32) {
    %c0_i32 = arith.constant 0 : i32
    %c0_i32_0 = arith.constant 0 : i32
    return %c0_i32, %arg1 : i32, i32
  }
  func.func @transform_3(%arg0: i32, %arg1: i32, %arg2: i32) -> (i32, i32) {
    %c0_i32 = arith.constant 0 : i32
    return %arg0, %arg1 : i32, i32
  }
}

</mosaic_0001>

<llo_original>
// kernel: ia3_forward.1
$region0: #{ia3_forward.1}
  #allocation0 [shape = 'u32[]', space=smem, size = 0x4, offset = 0x4, fixed_abs, tag = 'smem constant byte address 0x4 - core index']
  #allocation1 [shape = 'u32[72,128]{1,0:T(1,128)}', space=vmem, size = 0x9000, scoped, tag = 'internal scratch']
  %s0 = inlined_call_operand.vmem [shape: bf16[16,128], index: 0, kind: input, shape index: {}]
  %s1 = inlined_call_operand.vmem [shape: bf16[128,128], index: 1, kind: input, shape index: {}]
  %s2 = inlined_call_operand.vmem [shape: f32[2,128], index: 2, kind: input, shape index: {}]
  %s3 = inlined_call_operand.vmem [shape: f32[16,128], index: 3, kind: output, shape index: {}]
  %s4 = sld [smem:[#allocation0]]
  $region30: #{ia3_forward.1} parent=0
    _
  %s6 = ssub.s32 1, %s4
  %s7 = scalar_select 0, %s6, %s4
  // Predicated region
  $region2: #{ia3_forward.1} parent=0 // pred_check
    _
  $region3: #{ia3_forward.1} parent=0 // pred_check_branch
    %9 = sbr.rel (0) target = $region5
  $region4: #{ia3_forward.1} parent=0 // pred_region
    _
  $region5: #{ia3_forward.1} parent=0 // pred_fallthru
    _
  // Predicated region
  $region6: #{ia3_forward.1} parent=0 // pred_check
    _
  $region7: #{ia3_forward.1} parent=0 // pred_check_branch
    %11 = sbr.rel (0) target = $region9
  $region8: #{ia3_forward.1} parent=0 // pred_region
    _
  $region9: #{ia3_forward.1} parent=0 // pred_fallthru
    _
  // Predicated region
  $region10: #{ia3_forward.1} parent=0 // pred_check
    _
  $region11: #{ia3_forward.1} parent=0 // pred_check_branch
    %13 = sbr.rel (0) target = $region13
  $region12: #{ia3_forward.1} parent=0 // pred_region
    _
  $region13: #{ia3_forward.1} parent=0 // pred_fallthru
    _
  %p14 = scmp.eq.s32.totalorder 0, 0
  // Predicated region
  $region14: #{ia3_forward.1} parent=0 // pred_check
    %p15 = pneg %p14
  $region15: #{ia3_forward.1} parent=0 // pred_check_branch
    %17 = sbr.rel (%p15) target = $region17
  $region16: #{ia3_forward.1} parent=0 // pred_region
    %18 = vst [vmem:[%s3] sm:$0xff] 0.0
    %19 = vst [vmem:[%s3 + $0x8] sm:$0xff] 0.0
  $region17: #{ia3_forward.1} parent=0 // pred_fallthru
    _
  %v20 = vld [vmem:[%s3] sm:$0xff]
  %v21 = vld [vmem:[%s3 + $0x8] sm:$0xff]
  %v22 = vld [vmem:[%s0] sm:$0xf]
  %v23 = vld [vmem:[%s0 + $0x4] sm:$0xf]
  %v24 = vld [vmem:[%s1] sm:$0xf]
  %v25 = vld [vmem:[%s1 + $0x4] sm:$0xf]
  %v26 = vld [vmem:[%s1 + $0x8] sm:$0xf]
  %v27 = vld [vmem:[%s1 + $0xc] sm:$0xf]
  %v28 = vld [vmem:[%s1 + $0x10] sm:$0xf]
  %v29 = vld [vmem:[%s1 + $0x14] sm:$0xf]
  %v30 = vld [vmem:[%s1 + $0x18] sm:$0xf]
  %v31 = vld [vmem:[%s1 + $0x1c] sm:$0xf]
  %v32 = vld [vmem:[%s1 + $0x20] sm:$0xf]
  %v33 = vld [vmem:[%s1 + $0x24] sm:$0xf]
  %v34 = vld [vmem:[%s1 + $0x28] sm:$0xf]
  %v35 = vld [vmem:[%s1 + $0x2c] sm:$0xf]
  %v36 = vld [vmem:[%s1 + $0x30] sm:$0xf]
  %v37 = vld [vmem:[%s1 + $0x34] sm:$0xf]
  %v38 = vld [vmem:[%s1 + $0x38] sm:$0xf]
  %v39 = vld [vmem:[%s1 + $0x3c] sm:$0xf]
  %v42 = vunpack.c.l.b16 %v22
  %v43 = vunpack.c.l.b16 %v23
  %v44 = vpack.c.b16 %v43, %v42
  %v62 = vunpack.c.l.b16 %v24
  %v63 = vunpack.c.l.b16 %v25
  %v64 = vunpack.c.l.b16 %v26
  %v65 = vunpack.c.l.b16 %v27
  %v66 = vunpack.c.l.b16 %v28
  %v67 = vunpack.c.l.b16 %v29
  %v68 = vunpack.c.l.b16 %v30
  %v69 = vunpack.c.l.b16 %v31
  %v70 = vunpack.c.l.b16 %v32
  %v71 = vunpack.c.l.b16 %v33
  %v72 = vunpack.c.l.b16 %v34
  %v73 = vunpack.c.l.b16 %v35
  %v74 = vunpack.c.l.b16 %v36
  %v75 = vunpack.c.l.b16 %v37
  %v76 = vunpack.c.l.b16 %v38
  %v77 = vunpack.c.l.b16 %v39
  %v78 = vpack.c.b16 %v63, %v62
  %v79 = vpack.c.b16 %v65, %v64
  %v80 = vpack.c.b16 %v67, %v66
  %v81 = vpack.c.b16 %v69, %v68
  %v82 = vpack.c.b16 %v71, %v70
  %v83 = vpack.c.b16 %v73, %v72
  %v84 = vpack.c.b16 %v75, %v74
  %v85 = vpack.c.b16 %v77, %v76
  %94 = vmatpush.bf16.xpose.msra.mxu0 %v85
  %95 = vmatpush.bf16.xpose.msra.mxu0 %v84
  %96 = vmatpush.bf16.xpose.msra.mxu0 %v83
  %97 = vmatpush.bf16.xpose.msra.mxu0 %v82
  %98 = vmatpush.bf16.xpose.msra.mxu0 %v81
  %99 = vmatpush.bf16.xpose.msra.mxu0 %v80
  %100 = vmatpush.bf16.xpose.msra.mxu0 %v79
  %101 = vmatpush.bf16.xpose.msra.mxu0 %v78
  %102 = vmatmul.bf16.gmra.mxu0 %v44
  %v103 = vpop.f32.mrf.mxu0
  %v104 = vadd.f32 0.0, %v103
  %v105 = vpop.f32.mrf.mxu0
  %v106 = vadd.f32 0.0, %v105
  %107 = vdwg.mxu0
  %v108 = vadd.f32 %v20, %v104
  %v109 = vadd.f32 %v21, %v106
  %110 = vst [vmem:[%s3] sm:$0xff] %v108
  %111 = vst [vmem:[%s3 + $0x8] sm:$0xff] %v109
  // Predicated region
  $region18: #{ia3_forward.1} parent=0 // pred_check
    %p112 = pneg %p14
  $region19: #{ia3_forward.1} parent=0 // pred_check_branch
    %114 = sbr.rel (%p112) target = $region21
  $region20: #{ia3_forward.1} parent=0 // pred_region
    %v115 = vld [vmem:[%s2] sm:$0x1]
    %v116 = vld [vmem:[%s2 + $0x1] sm:$0x1]
    %v117 = vld [vmem:[%s3] sm:$0xff]
    %v118 = vld [vmem:[%s3 + $0x8] sm:$0xff]
    %v119 = vperm.slane %v115, 0
    %v120 = vmul.f32 %v117, %v119
    %v121 = vmul.f32 %v118, %v119
    %v122 = vperm.slane %v116, 0
    %v123 = vadd.f32 %v120, %v122
    %v124 = vadd.f32 %v121, %v122
    %125 = vst [vmem:[%s3] sm:$0xff] %v123
    %126 = vst [vmem:[%s3 + $0x8] sm:$0xff] %v124
  $region21: #{ia3_forward.1} parent=0 // pred_fallthru
    _
  // Predicated region
  $region22: #{ia3_forward.1} parent=0 // pred_check
    _
  $region23: #{ia3_forward.1} parent=0 // pred_check_branch
    %128 = sbr.rel (0) target = $region25
  $region24: #{ia3_forward.1} parent=0 // pred_region
    _
  $region25: #{ia3_forward.1} parent=0 // pred_fallthru
    _
  // Predicated region
  $region26: #{ia3_forward.1} parent=0 // pred_check
    _
  $region27: #{ia3_forward.1} parent=0 // pred_check_branch
    %130 = sbr.rel (0) target = $region29
  $region28: #{ia3_forward.1} parent=0 // pred_region
    _
  $region29: #{ia3_forward.1} parent=0 // pred_fallthru
    _

</llo_original>
